<compile_context>
chip_gen: v7x
topology: tpu7x:2x2x1
jax: 0.10.0
libtpu: 0.0.40
codegen_flags: <defaults>
</compile_context>

<pallas_src>
import jax
import jax.numpy as jnp
import numpy as np
from jax.experimental import pallas as pl
from jax.experimental.pallas import tpu as pltpu


def dmbf_kernel(feat_ref, wconf_ref, bconf_ref, wms_ref, bms_ref, onehot_ref,
                g_ref, gt_ref, gcls_ref, expand_ref, eyem_ref,
                sample_conf_ref, loss_ref, ms_logit_ref):
    B, _ = feat_ref.shape
    M = g_ref.shape[-1]          # number of modalities
    C = wms_ref.shape[-1]        # number of classes

    feat = feat_ref[...]         # (B, M*D)  modality-major concat of features
    onehot = onehot_ref[...]     # (B, C)

    # --- ConfidenceLayer: all M Linear layers as ONE block-diagonal matmul ---
    logits = jnp.dot(feat, wconf_ref[...],
                     preferred_element_type=jnp.float32) + bconf_ref[...]      # (B, M*C)

    # Grouped (per-modality) softmax over the class lanes. Subtracting the
    # global per-row max is valid inside every group (shift invariance), so a
    # single max / exp covers all modalities; group sums ride the idle MXU.
    row_max = jnp.max(logits, axis=-1, keepdims=True)                          # (B, 1)
    e = jnp.exp(logits - row_max)                                              # (B, M*C)
    group_sum = jnp.dot(e, g_ref[...], preferred_element_type=jnp.float32)     # (B, M)
    inv_gs = pl.reciprocal(group_sum, approx=True)                             # (B, M)
    inv_lanes = jnp.dot(inv_gs, gt_ref[...],
                        preferred_element_type=jnp.float32)                    # (B, M*C)
    probs = e * inv_lanes          # per-modality softmax(logits)                (B, M*C)

    # --- MSP confidence per modality (no lane concat: identity-row combine) --
    eyem = eyem_ref[...]                                                       # (M, M)
    conf_stack = jnp.zeros((B, M), jnp.float32)
    for m in range(M):             # M is static; tiny 2-D slice maxes
        cmax = jnp.max(probs[:, m * C:(m + 1) * C], axis=-1, keepdims=True)    # (B, 1)
        conf_stack = conf_stack + cmax * eyem[m:m + 1, :]                      # (B, M)

    # SAMPLE_conf: mean confidence over modalities (pre-scaling).
    sample_conf_ref[...] = jnp.mean(conf_stack, axis=-1, keepdims=True)        # (B, 1)

    # scaling='softmax' across modalities.
    cmx = jnp.max(conf_stack, axis=-1, keepdims=True)
    ce = jnp.exp(conf_stack - cmx)
    confidence = ce * pl.reciprocal(jnp.sum(ce, axis=-1, keepdims=True),
                                    approx=True)                               # (B, M)

    # --- Confidence-weighted fusion + MSclassifier: single matmul, K = M*D ---
    conf_cols = jnp.dot(confidence, expand_ref[...],
                        preferred_element_type=jnp.float32)                    # (B, M*D)
    wf = feat * conf_cols                                                      # (B, M*D)
    ms_pre = jnp.dot(wf, wms_ref[...],
                     preferred_element_type=jnp.float32) + bms_ref[...]        # (B, C)
    mmx = jnp.max(ms_pre, axis=-1, keepdims=True)
    me = jnp.exp(ms_pre - mmx)
    ms_logit = me * pl.reciprocal(jnp.sum(me, axis=-1, keepdims=True),
                                  approx=True)                                 # (B, C)
    ms_logit_ref[...] = ms_logit

    # --- Losses (faithful to source: CE applied to already-softmaxed logits) -
    smx = jnp.max(ms_logit, axis=-1, keepdims=True)
    s = ms_logit - smx
    logp_ms = s - jnp.log(jnp.sum(jnp.exp(s), axis=-1, keepdims=True))         # (B, C)
    ms_loss = -jnp.sum(onehot * logp_ms, axis=(0, 1), keepdims=True) / B       # (1, 1)

    # Confidence loss: one batched grouped log-softmax over (B, M*C).
    pmx = jnp.max(probs, axis=-1, keepdims=True)                               # (B, 1)
    sp = probs - pmx
    ep = jnp.exp(sp)
    lse = jnp.log(jnp.dot(ep, g_ref[...],
                          preferred_element_type=jnp.float32))                 # (B, M)
    logp = sp - jnp.dot(lse, gt_ref[...],
                        preferred_element_type=jnp.float32)                    # (B, M*C)
    per_class = jnp.dot(logp, gcls_ref[...],
                        preferred_element_type=jnp.float32)                    # (B, C) sum over modalities
    conf_loss = -jnp.sum(onehot * per_class, axis=(0, 1), keepdims=True) / (M * B)

    loss_ref[...] = ms_loss + conf_loss


@jax.jit
def dmbf_forward(feat, w_conf, b_conf, w_ms, b_ms, onehot):
    """feat: (M, B, D) post-backbone features; w_conf: (M, D, C); b_conf: (M, 1, C);
    w_ms: (M*D, C); b_ms: (1, C); onehot: (B, C)."""
    M, B, D = feat.shape
    C = w_conf.shape[-1]
    MD, MC = M * D, M * C

    # ---- Layout plumbing on the wrapper side (weights pack once under jit) --
    feat_cat = jnp.transpose(feat, (1, 0, 2)).reshape(B, MD)   # concat over modalities
    w_conf_bd = jnp.zeros((MD, MC), jnp.float32)               # block-diagonal weights
    for m in range(M):
        w_conf_bd = w_conf_bd.at[m * D:(m + 1) * D, m * C:(m + 1) * C].set(w_conf[m])
    b_conf_cat = b_conf.reshape(1, MC)

    # 0/1 structure constants (trace-time numpy -> baked into the executable).
    eye_m = np.eye(M, dtype=np.float32)
    g = np.kron(eye_m, np.ones((C, 1), np.float32))            # (M*C, M): group sum
    gt = np.ascontiguousarray(g.T)                             # (M, M*C): group broadcast
    gcls = np.kron(np.ones((M, 1), np.float32),
                   np.eye(C, dtype=np.float32))                # (M*C, C): sum over modalities
    expand = np.kron(eye_m, np.ones((1, D), np.float32))       # (M, M*D): modality -> feat block

    vmem = pl.BlockSpec(memory_space=pltpu.MemorySpace.VMEM)
    out_shapes = (
        jax.ShapeDtypeStruct((B, 1), jnp.float32),   # SAMPLE_conf
        jax.ShapeDtypeStruct((1, 1), jnp.float32),   # Loss
        jax.ShapeDtypeStruct((B, C), jnp.float32),   # MS_logit
    )
    sample_conf, loss, ms_logit = pl.pallas_call(
        dmbf_kernel,
        out_shape=out_shapes,
        in_specs=[vmem] * 11,
        out_specs=(vmem, vmem, vmem),
    )(feat_cat, w_conf_bd, b_conf_cat, w_ms, b_ms, onehot,
      g, gt, gcls, expand, eye_m)
    return sample_conf[:, 0], loss[0, 0], ms_logit


def dmbf_reference(feat, w_conf, b_conf, w_ms, b_ms, onehot):
    """Pure-JAX reference for correctness checking."""
    M, B, D = feat.shape
    C = w_conf.shape[-1]
    logits = jnp.einsum('mbd,mdc->mbc', feat, w_conf) + b_conf        # (M, B, C)
    probs = jax.nn.softmax(logits, axis=-1)
    conf_stack = jnp.max(probs, axis=-1).T                            # (B, M)
    sample_conf = jnp.mean(conf_stack, axis=1)
    confidence = jax.nn.softmax(conf_stack, axis=1)                   # (B, M)
    wf = feat * confidence.T[:, :, None]                              # (M, B, D)
    ms_pre = jnp.einsum('mbd,mdc->bc', wf, w_ms.reshape(M, D, C)) + b_ms[0]
    ms_logit = jax.nn.softmax(ms_pre, axis=-1)
    ms_loss = -jnp.mean(jnp.sum(onehot * jax.nn.log_softmax(ms_logit, axis=-1), axis=-1))
    conf_loss = -jnp.mean(jnp.sum(onehot[None] * jax.nn.log_softmax(probs, axis=-1), axis=-1))
    return sample_conf, ms_loss + conf_loss, ms_logit


if __name__ == "__main__":
    # Small synthetic config consistent with the module:
    # modalities M=3, batch B=8, per-modality feature F2=4 chans x T=8 -> D=32,
    # hid_dim analog = [32, 96], n_classes=3.
    M, B, C_feat, T_feat, NCLS = 3, 8, 4, 8, 3
    D0 = C_feat * T_feat
    D1 = M * D0

    key = jax.random.PRNGKey(0)
    k_feat, k_wc, k_bc, k_wms, k_bms, k_lbl = jax.random.split(key, 6)

    # Post-backbone features (stand-in for EEGNet4 outputs), flattened per modality.
    feat_nchw = jax.random.normal(k_feat, (M, B, C_feat, T_feat), jnp.float32)
    feat = feat_nchw.reshape(M, B, D0)

    # ConfidenceLayer: Linear(hid_dim[0]=D0, n_classes) per modality (stored (in, out)).
    w_conf = 0.1 * jax.random.normal(k_wc, (M, D0, NCLS), jnp.float32)
    b_conf = 0.1 * jax.random.normal(k_bc, (M, 1, NCLS), jnp.float32)

    # MSclassifier: Linear(hid_dim[1]=D1, n_classes), stored (in, out).
    w_ms = 0.1 * jax.random.normal(k_wms, (D1, NCLS), jnp.float32)
    b_ms = 0.1 * jax.random.normal(k_bms, (1, NCLS), jnp.float32)

    label = jax.random.randint(k_lbl, (B,), 0, NCLS)
    onehot = jax.nn.one_hot(label, NCLS, dtype=jnp.float32)

    sample_conf, loss, ms_logit = dmbf_forward(feat, w_conf, b_conf, w_ms, b_ms, onehot)
    jax.block_until_ready((sample_conf, loss, ms_logit))

    # Sanity check against pure-JAX reference (2e-3 tolerance absorbs the
    # approx-reciprocal softmax denominators).
    ref_sc, ref_loss, ref_logit = dmbf_reference(feat, w_conf, b_conf, w_ms, b_ms, onehot)
    assert jnp.allclose(sample_conf, ref_sc, atol=2e-3, rtol=2e-3)
    assert jnp.allclose(loss, ref_loss, atol=2e-3, rtol=2e-3)
    assert jnp.allclose(ms_logit, ref_logit, atol=2e-3, rtol=2e-3)

    print("KERNEL_OK")
</pallas_src>

<mosaic_0001>
module attributes {stable_mosaic.version = 11 : i64} {
  func.func @dmbf_kernel(%arg0: memref<8x96xf32, #tpu.memory_space<vmem>>, %arg1: memref<96x9xf32, #tpu.memory_space<vmem>>, %arg2: memref<1x9xf32, #tpu.memory_space<vmem>>, %arg3: memref<96x3xf32, #tpu.memory_space<vmem>>, %arg4: memref<1x3xf32, #tpu.memory_space<vmem>>, %arg5: memref<8x3xf32, #tpu.memory_space<vmem>>, %arg6: memref<9x3xf32, #tpu.memory_space<vmem>>, %arg7: memref<3x9xf32, #tpu.memory_space<vmem>>, %arg8: memref<9x3xf32, #tpu.memory_space<vmem>>, %arg9: memref<3x96xf32, #tpu.memory_space<vmem>>, %arg10: memref<3x3xf32, #tpu.memory_space<vmem>>, %arg11: memref<8x1xf32, #tpu.memory_space<vmem>>, %arg12: memref<1x1xf32, #tpu.memory_space<vmem>>, %arg13: memref<8x3xf32, #tpu.memory_space<vmem>>) attributes {dimension_semantics = [], scalar_prefetch = 0 : i64, scratch_operands = 0 : i64, tpu.core_type = #tpu.core_type<tc>} {
    %c0 = arith.constant 0 : index
    %c0_0 = arith.constant 0 : index
    %0 = vector.load %arg0[%c0, %c0_0] : memref<8x96xf32, #tpu.memory_space<vmem>>, vector<8x96xf32>
    %c0_1 = arith.constant 0 : index
    %c0_2 = arith.constant 0 : index
    %1 = vector.load %arg5[%c0_1, %c0_2] : memref<8x3xf32, #tpu.memory_space<vmem>>, vector<8x3xf32>
    %c0_3 = arith.constant 0 : index
    %c0_4 = arith.constant 0 : index
    %2 = vector.load %arg1[%c0_3, %c0_4] : memref<96x9xf32, #tpu.memory_space<vmem>>, vector<96x9xf32>
    %cst = arith.constant dense<0.000000e+00> : vector<8x9xf32>
    %3 = tpu.matmul %0, %2, %cst {dimension_numbers = #tpu.dot_dimension_numbers<[1], [0], [0], [1], [0, 0, 1, 1], [], []>} : vector<8x96xf32>, vector<96x9xf32>, vector<8x9xf32> -> vector<8x9xf32>
    %c0_5 = arith.constant 0 : index
    %c0_6 = arith.constant 0 : index
    %4 = vector.load %arg2[%c0_5, %c0_6] : memref<1x9xf32, #tpu.memory_space<vmem>>, vector<1x9xf32>
    %5 = vector.broadcast %4 : vector<1x9xf32> to vector<8x9xf32>
    %6 = arith.addf %3, %5 : vector<8x9xf32>
    %cst_7 = arith.constant dense<0xFF800000> : vector<8xf32>
    %7 = vector.multi_reduction <maximumf>, %6, %cst_7 [1] : vector<8x9xf32> to vector<8xf32>
    %8 = vector.shape_cast %7 : vector<8xf32> to vector<8x1xf32>
    %9 = vector.broadcast %8 : vector<8x1xf32> to vector<8x9xf32>
    %10 = arith.subf %6, %9 : vector<8x9xf32>
    %11 = math.exp %10 : vector<8x9xf32>
    %c0_8 = arith.constant 0 : index
    %c0_9 = arith.constant 0 : index
    %12 = vector.load %arg6[%c0_8, %c0_9] : memref<9x3xf32, #tpu.memory_space<vmem>>, vector<9x3xf32>
    %cst_10 = arith.constant dense<0.000000e+00> : vector<8x3xf32>
    %13 = tpu.matmul %11, %12, %cst_10 {dimension_numbers = #tpu.dot_dimension_numbers<[1], [0], [0], [1], [0, 0, 1, 1], [], []>} : vector<8x9xf32>, vector<9x3xf32>, vector<8x3xf32> -> vector<8x3xf32>
    %14 = tpu.reciprocal %13 {approx = true} : vector<8x3xf32> -> vector<8x3xf32>
    %c0_11 = arith.constant 0 : index
    %c0_12 = arith.constant 0 : index
    %15 = vector.load %arg7[%c0_11, %c0_12] : memref<3x9xf32, #tpu.memory_space<vmem>>, vector<3x9xf32>
    %cst_13 = arith.constant dense<0.000000e+00> : vector<8x9xf32>
    %16 = tpu.matmul %14, %15, %cst_13 {dimension_numbers = #tpu.dot_dimension_numbers<[1], [0], [0], [1], [0, 0, 1, 1], [], []>} : vector<8x3xf32>, vector<3x9xf32>, vector<8x9xf32> -> vector<8x9xf32>
    %17 = arith.mulf %11, %16 : vector<8x9xf32>
    %c0_14 = arith.constant 0 : index
    %c0_15 = arith.constant 0 : index
    %18 = vector.load %arg10[%c0_14, %c0_15] : memref<3x3xf32, #tpu.memory_space<vmem>>, vector<3x3xf32>
    %cst_16 = arith.constant 0.000000e+00 : f32
    %19 = vector.broadcast %cst_16 : f32 to vector<8x3xf32>
    %20 = vector.extract_strided_slice %17 {offsets = [0, 0], sizes = [8, 3], strides = [1, 1]} : vector<8x9xf32> to vector<8x3xf32>
    %cst_17 = arith.constant dense<0xFF800000> : vector<8xf32>
    %21 = vector.multi_reduction <maximumf>, %20, %cst_17 [1] : vector<8x3xf32> to vector<8xf32>
    %22 = vector.shape_cast %21 : vector<8xf32> to vector<8x1xf32>
    %23 = vector.extract_strided_slice %18 {offsets = [0, 0], sizes = [1, 3], strides = [1, 1]} : vector<3x3xf32> to vector<1x3xf32>
    %24 = vector.broadcast %22 : vector<8x1xf32> to vector<8x3xf32>
    %25 = vector.broadcast %23 : vector<1x3xf32> to vector<8x3xf32>
    %26 = arith.mulf %24, %25 : vector<8x3xf32>
    %27 = arith.addf %19, %26 : vector<8x3xf32>
    %28 = vector.extract_strided_slice %17 {offsets = [0, 3], sizes = [8, 3], strides = [1, 1]} : vector<8x9xf32> to vector<8x3xf32>
    %cst_18 = arith.constant dense<0xFF800000> : vector<8xf32>
    %29 = vector.multi_reduction <maximumf>, %28, %cst_18 [1] : vector<8x3xf32> to vector<8xf32>
    %30 = vector.shape_cast %29 : vector<8xf32> to vector<8x1xf32>
    %31 = vector.extract_strided_slice %18 {offsets = [1, 0], sizes = [1, 3], strides = [1, 1]} : vector<3x3xf32> to vector<1x3xf32>
    %32 = vector.broadcast %30 : vector<8x1xf32> to vector<8x3xf32>
    %33 = vector.broadcast %31 : vector<1x3xf32> to vector<8x3xf32>
    %34 = arith.mulf %32, %33 : vector<8x3xf32>
    %35 = arith.addf %27, %34 : vector<8x3xf32>
    %36 = vector.extract_strided_slice %17 {offsets = [0, 6], sizes = [8, 3], strides = [1, 1]} : vector<8x9xf32> to vector<8x3xf32>
    %cst_19 = arith.constant dense<0xFF800000> : vector<8xf32>
    %37 = vector.multi_reduction <maximumf>, %36, %cst_19 [1] : vector<8x3xf32> to vector<8xf32>
    %38 = vector.shape_cast %37 : vector<8xf32> to vector<8x1xf32>
    %39 = vector.extract_strided_slice %18 {offsets = [2, 0], sizes = [1, 3], strides = [1, 1]} : vector<3x3xf32> to vector<1x3xf32>
    %40 = vector.broadcast %38 : vector<8x1xf32> to vector<8x3xf32>
    %41 = vector.broadcast %39 : vector<1x3xf32> to vector<8x3xf32>
    %42 = arith.mulf %40, %41 : vector<8x3xf32>
    %43 = arith.addf %35, %42 : vector<8x3xf32>
    %cst_20 = arith.constant dense<0.000000e+00> : vector<8xf32>
    %44 = vector.multi_reduction <add>, %43, %cst_20 [1] : vector<8x3xf32> to vector<8xf32>
    %45 = vector.shape_cast %44 : vector<8xf32> to vector<8x1xf32>
    %cst_21 = arith.constant 3.000000e+00 : f32
    %46 = vector.broadcast %cst_21 : f32 to vector<8x1xf32>
    %47 = arith.divf %45, %46 : vector<8x1xf32>
    %c0_22 = arith.constant 0 : index
    %c0_23 = arith.constant 0 : index
    %48 = vector.load %arg11[%c0_22, %c0_23] : memref<8x1xf32, #tpu.memory_space<vmem>>, vector<8x1xf32>
    tpu.vector_store %arg11[%c0_22, %c0_23], %47 {strides = array<i32>} : memref<8x1xf32, #tpu.memory_space<vmem>>, vector<8x1xf32>,
    %cst_24 = arith.constant dense<0xFF800000> : vector<8xf32>
    %49 = vector.multi_reduction <maximumf>, %43, %cst_24 [1] : vector<8x3xf32> to vector<8xf32>
    %50 = vector.shape_cast %49 : vector<8xf32> to vector<8x1xf32>
    %51 = vector.broadcast %50 : vector<8x1xf32> to vector<8x3xf32>
    %52 = arith.subf %43, %51 : vector<8x3xf32>
    %53 = math.exp %52 : vector<8x3xf32>
    %cst_25 = arith.constant dense<0.000000e+00> : vector<8xf32>
    %54 = vector.multi_reduction <add>, %53, %cst_25 [1] : vector<8x3xf32> to vector<8xf32>
    %55 = vector.shape_cast %54 : vector<8xf32> to vector<8x1xf32>
    %56 = tpu.reciprocal %55 {approx = true} : vector<8x1xf32> -> vector<8x1xf32>
    %57 = vector.broadcast %56 : vector<8x1xf32> to vector<8x3xf32>
    %58 = arith.mulf %53, %57 : vector<8x3xf32>
    %c0_26 = arith.constant 0 : index
    %c0_27 = arith.constant 0 : index
    %59 = vector.load %arg9[%c0_26, %c0_27] : memref<3x96xf32, #tpu.memory_space<vmem>>, vector<3x96xf32>
    %cst_28 = arith.constant dense<0.000000e+00> : vector<8x96xf32>
    %60 = tpu.matmul %58, %59, %cst_28 {dimension_numbers = #tpu.dot_dimension_numbers<[1], [0], [0], [1], [0, 0, 1, 1], [], []>} : vector<8x3xf32>, vector<3x96xf32>, vector<8x96xf32> -> vector<8x96xf32>
    %61 = arith.mulf %0, %60 : vector<8x96xf32>
    %c0_29 = arith.constant 0 : index
    %c0_30 = arith.constant 0 : index
    %62 = vector.load %arg3[%c0_29, %c0_30] : memref<96x3xf32, #tpu.memory_space<vmem>>, vector<96x3xf32>
    %cst_31 = arith.constant dense<0.000000e+00> : vector<8x3xf32>
    %63 = tpu.matmul %61, %62, %cst_31 {dimension_numbers = #tpu.dot_dimension_numbers<[1], [0], [0], [1], [0, 0, 1, 1], [], []>} : vector<8x96xf32>, vector<96x3xf32>, vector<8x3xf32> -> vector<8x3xf32>
    %c0_32 = arith.constant 0 : index
    %c0_33 = arith.constant 0 : index
    %64 = vector.load %arg4[%c0_32, %c0_33] : memref<1x3xf32, #tpu.memory_space<vmem>>, vector<1x3xf32>
    %65 = vector.broadcast %64 : vector<1x3xf32> to vector<8x3xf32>
    %66 = arith.addf %63, %65 : vector<8x3xf32>
    %cst_34 = arith.constant dense<0xFF800000> : vector<8xf32>
    %67 = vector.multi_reduction <maximumf>, %66, %cst_34 [1] : vector<8x3xf32> to vector<8xf32>
    %68 = vector.shape_cast %67 : vector<8xf32> to vector<8x1xf32>
    %69 = vector.broadcast %68 : vector<8x1xf32> to vector<8x3xf32>
    %70 = arith.subf %66, %69 : vector<8x3xf32>
    %71 = math.exp %70 : vector<8x3xf32>
    %cst_35 = arith.constant dense<0.000000e+00> : vector<8xf32>
    %72 = vector.multi_reduction <add>, %71, %cst_35 [1] : vector<8x3xf32> to vector<8xf32>
    %73 = vector.shape_cast %72 : vector<8xf32> to vector<8x1xf32>
    %74 = tpu.reciprocal %73 {approx = true} : vector<8x1xf32> -> vector<8x1xf32>
    %75 = vector.broadcast %74 : vector<8x1xf32> to vector<8x3xf32>
    %76 = arith.mulf %71, %75 : vector<8x3xf32>
    %c0_36 = arith.constant 0 : index
    %c0_37 = arith.constant 0 : index
    %77 = vector.load %arg13[%c0_36, %c0_37] : memref<8x3xf32, #tpu.memory_space<vmem>>, vector<8x3xf32>
    tpu.vector_store %arg13[%c0_36, %c0_37], %76 {strides = array<i32>} : memref<8x3xf32, #tpu.memory_space<vmem>>, vector<8x3xf32>,
    %cst_38 = arith.constant dense<0xFF800000> : vector<8xf32>
    %78 = vector.multi_reduction <maximumf>, %76, %cst_38 [1] : vector<8x3xf32> to vector<8xf32>
    %79 = vector.shape_cast %78 : vector<8xf32> to vector<8x1xf32>
    %80 = vector.broadcast %79 : vector<8x1xf32> to vector<8x3xf32>
    %81 = arith.subf %76, %80 : vector<8x3xf32>
    %82 = math.exp %81 : vector<8x3xf32>
    %cst_39 = arith.constant dense<0.000000e+00> : vector<8xf32>
    %83 = vector.multi_reduction <add>, %82, %cst_39 [1] : vector<8x3xf32> to vector<8xf32>
    %84 = vector.shape_cast %83 : vector<8xf32> to vector<8x1xf32>
    %85 = math.log %84 : vector<8x1xf32>
    %86 = vector.broadcast %85 : vector<8x1xf32> to vector<8x3xf32>
    %87 = arith.subf %81, %86 : vector<8x3xf32>
    %88 = arith.mulf %1, %87 : vector<8x3xf32>
    %89 = vector.shape_cast %88 : vector<8x3xf32> to vector<1x8x3xf32>
    %cst_40 = arith.constant dense<0.000000e+00> : vector<1xf32>
    %90 = vector.multi_reduction <add>, %89, %cst_40 [1, 2] : vector<1x8x3xf32> to vector<1xf32>
    %91 = vector.shape_cast %90 : vector<1xf32> to vector<1x1x1xf32>
    %92 = vector.extract %91[0, 0, 0] : f32 from vector<1x1x1xf32>
    %93 = vector.broadcast %92 : f32 to vector<1x1xf32>
    %cst_41 = arith.constant 0.000000e+00 : f32
    %94 = vector.broadcast %cst_41 : f32 to vector<1x1xf32>
    %95 = arith.subf %94, %93 : vector<1x1xf32>
    %cst_42 = arith.constant 8.000000e+00 : f32
    %96 = vector.broadcast %cst_42 : f32 to vector<1x1xf32>
    %97 = arith.divf %95, %96 : vector<1x1xf32>
    %cst_43 = arith.constant dense<0xFF800000> : vector<8xf32>
    %98 = vector.multi_reduction <maximumf>, %17, %cst_43 [1] : vector<8x9xf32> to vector<8xf32>
    %99 = vector.shape_cast %98 : vector<8xf32> to vector<8x1xf32>
    %100 = vector.broadcast %99 : vector<8x1xf32> to vector<8x9xf32>
    %101 = arith.subf %17, %100 : vector<8x9xf32>
    %102 = math.exp %101 : vector<8x9xf32>
    %c0_44 = arith.constant 0 : index
    %c0_45 = arith.constant 0 : index
    %103 = vector.load %arg6[%c0_44, %c0_45] : memref<9x3xf32, #tpu.memory_space<vmem>>, vector<9x3xf32>
    %cst_46 = arith.constant dense<0.000000e+00> : vector<8x3xf32>
    %104 = tpu.matmul %102, %103, %cst_46 {dimension_numbers = #tpu.dot_dimension_numbers<[1], [0], [0], [1], [0, 0, 1, 1], [], []>} : vector<8x9xf32>, vector<9x3xf32>, vector<8x3xf32> -> vector<8x3xf32>
    %105 = math.log %104 : vector<8x3xf32>
    %c0_47 = arith.constant 0 : index
    %c0_48 = arith.constant 0 : index
    %106 = vector.load %arg7[%c0_47, %c0_48] : memref<3x9xf32, #tpu.memory_space<vmem>>, vector<3x9xf32>
    %cst_49 = arith.constant dense<0.000000e+00> : vector<8x9xf32>
    %107 = tpu.matmul %105, %106, %cst_49 {dimension_numbers = #tpu.dot_dimension_numbers<[1], [0], [0], [1], [0, 0, 1, 1], [], []>} : vector<8x3xf32>, vector<3x9xf32>, vector<8x9xf32> -> vector<8x9xf32>
    %108 = arith.subf %101, %107 : vector<8x9xf32>
    %c0_50 = arith.constant 0 : index
    %c0_51 = arith.constant 0 : index
    %109 = vector.load %arg8[%c0_50, %c0_51] : memref<9x3xf32, #tpu.memory_space<vmem>>, vector<9x3xf32>
    %cst_52 = arith.constant dense<0.000000e+00> : vector<8x3xf32>
    %110 = tpu.matmul %108, %109, %cst_52 {dimension_numbers = #tpu.dot_dimension_numbers<[1], [0], [0], [1], [0, 0, 1, 1], [], []>} : vector<8x9xf32>, vector<9x3xf32>, vector<8x3xf32> -> vector<8x3xf32>
    %111 = arith.mulf %1, %110 : vector<8x3xf32>
    %112 = vector.shape_cast %111 : vector<8x3xf32> to vector<1x8x3xf32>
    %cst_53 = arith.constant dense<0.000000e+00> : vector<1xf32>
    %113 = vector.multi_reduction <add>, %112, %cst_53 [1, 2] : vector<1x8x3xf32> to vector<1xf32>
    %114 = vector.shape_cast %113 : vector<1xf32> to vector<1x1x1xf32>
    %115 = vector.extract %114[0, 0, 0] : f32 from vector<1x1x1xf32>
    %116 = vector.broadcast %115 : f32 to vector<1x1xf32>
    %cst_54 = arith.constant 0.000000e+00 : f32
    %117 = vector.broadcast %cst_54 : f32 to vector<1x1xf32>
    %118 = arith.subf %117, %116 : vector<1x1xf32>
    %cst_55 = arith.constant 2.400000e+01 : f32
    %119 = vector.broadcast %cst_55 : f32 to vector<1x1xf32>
    %120 = arith.divf %118, %119 : vector<1x1xf32>
    %121 = arith.addf %97, %120 : vector<1x1xf32>
    %c0_56 = arith.constant 0 : index
    %c0_57 = arith.constant 0 : index
    %122 = vector.load %arg12[%c0_56, %c0_57] : memref<1x1xf32, #tpu.memory_space<vmem>>, vector<1x1xf32>
    tpu.vector_store %arg12[%c0_56, %c0_57], %121 {strides = array<i32>} : memref<1x1xf32, #tpu.memory_space<vmem>>, vector<1x1xf32>,
    return
  }
}

</mosaic_0001>

<llo_original>
// kernel: dmbf_forward.1
$region0: #{dmbf_forward.1}
  #allocation0 [shape = 'u32[]', space=smem, size = 0x4, offset = 0x4, fixed_abs, tag = 'smem constant byte address 0x4 - core index']
  #allocation1 [shape = 'u32[144,128]{1,0:T(1,128)}', space=vmem, size = 0x12000, scoped, tag = 'internal scratch']
  %s0 = inlined_call_operand.vmem [shape: f32[8,96], index: 0, kind: input, shape index: {}]
  %s1 = inlined_call_operand.vmem [shape: f32[96,9], index: 1, kind: input, shape index: {}]
  %s2 = inlined_call_operand.vmem [shape: f32[1,9], index: 2, kind: input, shape index: {}]
  %s3 = inlined_call_operand.vmem [shape: f32[96,3], index: 3, kind: input, shape index: {}]
  %s4 = inlined_call_operand.vmem [shape: f32[1,3], index: 4, kind: input, shape index: {}]
  %s5 = inlined_call_operand.vmem [shape: f32[8,3], index: 5, kind: input, shape index: {}]
  %s6 = inlined_call_operand.vmem [shape: f32[9,3], index: 6, kind: input, shape index: {}]
  %s7 = inlined_call_operand.vmem [shape: f32[3,9], index: 7, kind: input, shape index: {}]
  %s8 = inlined_call_operand.vmem [shape: f32[9,3], index: 8, kind: input, shape index: {}]
  %s9 = inlined_call_operand.vmem [shape: f32[3,96], index: 9, kind: input, shape index: {}]
  %s10 = inlined_call_operand.vmem [shape: f32[3,3], index: 10, kind: input, shape index: {}]
  %s11 = inlined_call_operand.vmem [shape: f32[8,1], index: 11, kind: output, shape index: {0}]
  %s12 = inlined_call_operand.hbm [shape: f32[1,1], index: 12, kind: output, shape index: {1}]
  %s13 = inlined_call_operand.vmem [shape: f32[8,3], index: 13, kind: output, shape index: {2}]
  %14 = xla_tuple %s11, %s12, %s13
  %s15 = sld [smem:[#allocation0]]
  $region70: #{dmbf_forward.1} parent=0
    _
  %s17 = ssub.s32 1, %s15
  %s18 = scalar_select 0, %s17, %s15
  $region1: #{dmbf_forward.1} parent=0
    #allocation2 [shape = 'u8[512]{0}', space=vmem, size = 0x400, scoped, tag = 'output window, operand 1, single buffered']
    #allocation3 [shape = 's32[1]{0}', space=sflag, size = 0x4, scoped, tag = 'scoped memory for dmbf_forward.1']
    %19 = vsyncpa [#allocation3], 0
    // Predicated region
    $region2: #{dmbf_forward.1} parent=1 // pred_check
      _
    $region3: #{dmbf_forward.1} parent=1 // pred_check_branch
      %21 = sbr.rel (0) target = $region5
    $region4: #{dmbf_forward.1} parent=1 // pred_region
      _
    $region5: #{dmbf_forward.1} parent=1 // pred_fallthru
      _
    // Predicated region
    $region6: #{dmbf_forward.1} parent=1 // pred_check
      _
    $region7: #{dmbf_forward.1} parent=1 // pred_check_branch
      %23 = sbr.rel (0) target = $region9
    $region8: #{dmbf_forward.1} parent=1 // pred_region
      _
    $region9: #{dmbf_forward.1} parent=1 // pred_fallthru
      _
    // Predicated region
    $region10: #{dmbf_forward.1} parent=1 // pred_check
      _
    $region11: #{dmbf_forward.1} parent=1 // pred_check_branch
      %25 = sbr.rel (0) target = $region13
    $region12: #{dmbf_forward.1} parent=1 // pred_region
      _
    $region13: #{dmbf_forward.1} parent=1 // pred_fallthru
      _
    // Predicated region
    $region14: #{dmbf_forward.1} parent=1 // pred_check
      _
    $region15: #{dmbf_forward.1} parent=1 // pred_check_branch
      %27 = sbr.rel (0) target = $region17
    $region16: #{dmbf_forward.1} parent=1 // pred_region
      _
    $region17: #{dmbf_forward.1} parent=1 // pred_fallthru
      _
    // Predicated region
    $region18: #{dmbf_forward.1} parent=1 // pred_check
      _
    $region19: #{dmbf_forward.1} parent=1 // pred_check_branch
      %29 = sbr.rel (0) target = $region21
    $region20: #{dmbf_forward.1} parent=1 // pred_region
      _
    $region21: #{dmbf_forward.1} parent=1 // pred_fallthru
      _
    // Predicated region
    $region22: #{dmbf_forward.1} parent=1 // pred_check
      _
    $region23: #{dmbf_forward.1} parent=1 // pred_check_branch
      %31 = sbr.rel (0) target = $region25
    $region24: #{dmbf_forward.1} parent=1 // pred_region
      _
    $region25: #{dmbf_forward.1} parent=1 // pred_fallthru
      _
    // Predicated region
    $region26: #{dmbf_forward.1} parent=1 // pred_check
      _
    $region27: #{dmbf_forward.1} parent=1 // pred_check_branch
      %33 = sbr.rel (0) target = $region29
    $region28: #{dmbf_forward.1} parent=1 // pred_region
      _
    $region29: #{dmbf_forward.1} parent=1 // pred_fallthru
      _
    // Predicated region
    $region30: #{dmbf_forward.1} parent=1 // pred_check
      _
    $region31: #{dmbf_forward.1} parent=1 // pred_check_branch
      %35 = sbr.rel (0) target = $region33
    $region32: #{dmbf_forward.1} parent=1 // pred_region
      _
    $region33: #{dmbf_forward.1} parent=1 // pred_fallthru
      _
    // Predicated region
    $region34: #{dmbf_forward.1} parent=1 // pred_check
      _
    $region35: #{dmbf_forward.1} parent=1 // pred_check_branch
      %37 = sbr.rel (0) target = $region37
    $region36: #{dmbf_forward.1} parent=1 // pred_region
      _
    $region37: #{dmbf_forward.1} parent=1 // pred_fallthru
      _
    // Predicated region
    $region38: #{dmbf_forward.1} parent=1 // pred_check
      _
    $region39: #{dmbf_forward.1} parent=1 // pred_check_branch
      %39 = sbr.rel (0) target = $region41
    $region40: #{dmbf_forward.1} parent=1 // pred_region
      _
    $region41: #{dmbf_forward.1} parent=1 // pred_fallthru
      _
    // Predicated region
    $region42: #{dmbf_forward.1} parent=1 // pred_check
      _
    $region43: #{dmbf_forward.1} parent=1 // pred_check_branch
      %41 = sbr.rel (0) target = $region45
    $region44: #{dmbf_forward.1} parent=1 // pred_region
      _
    $region45: #{dmbf_forward.1} parent=1 // pred_fallthru
      _
    %v42 = vld [vmem:[%s0] sm:$0xff]
    %v43 = vld [vmem:[%s5] sm:$0xff]
    %v44 = vld [vmem:[%s1] sm:$0xff]
    %v45 = vld [vmem:[%s1 + $0x8] sm:$0xff]
    %v46 = vld [vmem:[%s1 + $0x10] sm:$0xff]
    %v47 = vld [vmem:[%s1 + $0x18] sm:$0xff]
    %v48 = vld [vmem:[%s1 + $0x20] sm:$0xff]
    %v49 = vld [vmem:[%s1 + $0x28] sm:$0xff]
    %v50 = vld [vmem:[%s1 + $0x30] sm:$0xff]
    %v51 = vld [vmem:[%s1 + $0x38] sm:$0xff]
    %v52 = vld [vmem:[%s1 + $0x40] sm:$0xff]
    %v53 = vld [vmem:[%s1 + $0x48] sm:$0xff]
    %v54 = vld [vmem:[%s1 + $0x50] sm:$0xff]
    %v55 = vld [vmem:[%s1 + $0x58] sm:$0xff]
    %v56 = vld [vmem:[%s2] sm:$0x1]
    %v58 = vlaneseq
    %v59 = vshrl.u32 %v58, 7
    %v60 = vsub.s32 0, %v59
    %v61 = vrot.slane %v56, %v60
    %vm63 = vcmask 785408
    %v65 = vsel %vm63, %v42, 0
    %67 = vmatprep.subr.mxu0 0.0
    %68 = vmatpush1.msra.mxu0 %v44
    %69 = vmatprep.subr.mxu0 0.0
    %70 = vmatpush1.msra.mxu0 %v45
    %71 = vmatprep.subr.mxu0 0.0
    %72 = vmatpush1.msra.mxu0 %v46
    %73 = vmatprep.subr.mxu0 0.0
    %74 = vmatpush1.msra.mxu0 %v47
    %75 = vmatprep.subr.mxu0 0.0
    %76 = vmatpush1.msra.mxu0 %v48
    %77 = vmatprep.subr.mxu0 0.0
    %78 = vmatpush1.msra.mxu0 %v49
    %79 = vmatprep.subr.mxu0 0.0
    %80 = vmatpush1.msra.mxu0 %v50
    %81 = vmatprep.subr.mxu0 0.0
    %82 = vmatpush1.msra.mxu0 %v51
    %83 = vmatprep.subr.mxu0 0.0
    %84 = vmatpush1.msra.mxu0 %v52
    %85 = vmatprep.subr.mxu0 0.0
    %86 = vmatpush1.msra.mxu0 %v53
    %87 = vmatprep.subr.mxu0 0.0
    %88 = vmatpush1.msra.mxu0 %v54
    %89 = vmatprep.subr.mxu0 0.0
    %90 = vmatpush1.msra.mxu0 %v55
    %91 = vmatprep.subr.mxu0 0.0
    %92 = vmatpush1.msra.mxu0 0.0
    %93 = vmatprep.subr.mxu0 0.0
    %94 = vmatpush1.msra.mxu0 0.0
    %95 = vmatprep.subr.mxu0 0.0
    %96 = vmatpush1.msra.mxu0 0.0
    %97 = vmatprep.subr.mxu0 0.0
    %98 = vmatpush1.msra.mxu0 0.0
    %99 = vmatprep.subr.mxu0 0.0
    %100 = vmatpush1.msra.mxu0 0.0
    %101 = vmatprep.subr.mxu0 0.0
    %102 = vmatpush1.msra.mxu0 0.0
    %103 = vmatprep.subr.mxu0 0.0
    %104 = vmatpush1.msra.mxu0 0.0
    %105 = vmatprep.subr.mxu0 0.0
    %106 = vmatpush1.msra.mxu0 0.0
    %107 = vmatprep.subr.mxu0 0.0
    %108 = vmatpush1.msra.mxu0 0.0
    %109 = vmatprep.subr.mxu0 0.0
    %110 = vmatpush1.msra.mxu0 0.0
    %111 = vmatprep.subr.mxu0 0.0
    %112 = vmatpush1.msra.mxu0 0.0
    %113 = vmatprep.subr.mxu0 0.0
    %114 = vmatpush1.msra.mxu0 0.0
    %115 = vmatprep.subr.mxu0 0.0
    %116 = vmatpush1.msra.mxu0 0.0
    %117 = vmatprep.subr.mxu0 0.0
    %118 = vmatpush1.msra.mxu0 0.0
    %119 = vmatprep.subr.mxu0 0.0
    %120 = vmatpush1.msra.mxu0 0.0
    %121 = vmatprep.subr.mxu0 0.0
    %122 = vmatpush1.msra.mxu0 0.0
    %123 = vmatprep.subr.mxu0 0.0
    %124 = vmatpush1.msra.mxu0 0.0
    %125 = vmatprep.subr.mxu0 0.0
    %126 = vmatpush1.msra.mxu0 0.0
    %127 = vmatprep.subr.mxu0 0.0
    %128 = vmatpush1.msra.mxu0 0.0
    %129 = vmatprep.subr.mxu0 0.0
    %130 = vmatpush1.msra.mxu0 0.0
    %131 = vmatprep.mubr.f32.mxu0 0.0
    %132 = vmatmul.mubr.f32.gmra.mrb[0].mxu0 %v65
    %v133 = vpop.f32.mrb[0].mxu0
    %v134 = vadd.f32 %v61, %v133
    %v135 = vpop.f32.mrb[0].mxu0
    %136 = vdwg.mxu0
    %vm137 = vcmask 72704
    %v138 = vsel %vm137, %v134, -inf
    %139 = vmax.xlane.f32.xlu0 %v138
    %v140 = vpop.xlane.xlu0 %139
    %v141 = vsub.f32 %v134, %v140
    %v142 = vmul.f32 %v141, 1.442695
    %v143 = vpow.pop %v142
    %v144 = vld [vmem:[%s6] sm:$0xff]
    %v145 = vld [vmem:[%s6 + $0x8] sm:$0x1]
    %v147 = vsel %vm137, %v143, 0
    %vm149 = vcmask 1040384
    %v151 = vsel %vm149, %v145, 0
    %153 = vmatprep.subr.mxu0 0.0
    %154 = vmatpush1.msra.mxu0 %v144
    %155 = vmatprep.subr.mxu0 0.0
    %156 = vmatpush1.msra.mxu0 %v151
    %157 = vmatprep.subr.mxu0 0.0
    %158 = vmatpush1.msra.mxu0 0.0
    %159 = vmatprep.subr.mxu0 0.0
    %160 = vmatpush1.msra.mxu0 0.0
    %161 = vmatprep.subr.mxu0 0.0
    %162 = vmatpush1.msra.mxu0 0.0
    %163 = vmatprep.subr.mxu0 0.0
    %164 = vmatpush1.msra.mxu0 0.0
    %165 = vmatprep.subr.mxu0 0.0
    %166 = vmatpush1.msra.mxu0 0.0
    %167 = vmatprep.subr.mxu0 0.0
    %168 = vmatpush1.msra.mxu0 0.0
    %169 = vmatprep.subr.mxu0 0.0
    %170 = vmatpush1.msra.mxu0 0.0
    %171 = vmatprep.subr.mxu0 0.0
    %172 = vmatpush1.msra.mxu0 0.0
    %173 = vmatprep.subr.mxu0 0.0
    %174 = vmatpush1.msra.mxu0 0.0
    %175 = vmatprep.subr.mxu0 0.0
    %176 = vmatpush1.msra.mxu0 0.0
    %177 = vmatprep.subr.mxu0 0.0
    %178 = vmatpush1.msra.mxu0 0.0
    %179 = vmatprep.subr.mxu0 0.0
    %180 = vmatpush1.msra.mxu0 0.0
    %181 = vmatprep.subr.mxu0 0.0
    %182 = vmatpush1.msra.mxu0 0.0
    %183 = vmatprep.subr.mxu0 0.0
    %184 = vmatpush1.msra.mxu0 0.0
    %185 = vmatprep.subr.mxu0 0.0
    %186 = vmatpush1.msra.mxu0 0.0
    %187 = vmatprep.subr.mxu0 0.0
    %188 = vmatpush1.msra.mxu0 0.0
    %189 = vmatprep.subr.mxu0 0.0
    %190 = vmatpush1.msra.mxu0 0.0
    %191 = vmatprep.subr.mxu0 0.0
    %192 = vmatpush1.msra.mxu0 0.0
    %193 = vmatprep.subr.mxu0 0.0
    %194 = vmatpush1.msra.mxu0 0.0
    %195 = vmatprep.subr.mxu0 0.0
    %196 = vmatpush1.msra.mxu0 0.0
    %197 = vmatprep.subr.mxu0 0.0
    %198 = vmatpush1.msra.mxu0 0.0
    %199 = vmatprep.subr.mxu0 0.0
    %200 = vmatpush1.msra.mxu0 0.0
    %201 = vmatprep.subr.mxu0 0.0
    %202 = vmatpush1.msra.mxu0 0.0
    %203 = vmatprep.subr.mxu0 0.0
    %204 = vmatpush1.msra.mxu0 0.0
    %205 = vmatprep.subr.mxu0 0.0
    %206 = vmatpush1.msra.mxu0 0.0
    %207 = vmatprep.subr.mxu0 0.0
    %208 = vmatpush1.msra.mxu0 0.0
    %209 = vmatprep.subr.mxu0 0.0
    %210 = vmatpush1.msra.mxu0 0.0
    %211 = vmatprep.subr.mxu0 0.0
    %212 = vmatpush1.msra.mxu0 0.0
    %213 = vmatprep.subr.mxu0 0.0
    %214 = vmatpush1.msra.mxu0 0.0
    %215 = vmatprep.subr.mxu0 0.0
    %216 = vmatpush1.msra.mxu0 0.0
    %217 = vmatprep.mubr.f32.mxu0 0.0
    %218 = vmatmul.mubr.f32.gmra.mrb[0].mxu0 %v147
    %v219 = vpop.f32.mrb[0].mxu0
    %v220 = vadd.f32 0.0, %v219
    %v221 = vpop.f32.mrb[0].mxu0
    %222 = vdwg.mxu0
    %v223 = vrcp.pop %v220
    %v224 = vld [vmem:[%s7] sm:$0x7]
    %vm225 = vcmask 23552
    %v227 = vsel %vm225, %v223, 0
    %vm229 = vcmask 1042432
    %v231 = vsel %vm229, %v224, 0
    %233 = vmatprep.subr.mxu0 0.0
    %234 = vmatpush1.msra.mxu0 %v231
    %235 = vmatprep.subr.mxu0 0.0
    %236 = vmatpush1.msra.mxu0 0.0
    %237 = vmatprep.subr.mxu0 0.0
    %238 = vmatpush1.msra.mxu0 0.0
    %239 = vmatprep.subr.mxu0 0.0
    %240 = vmatpush1.msra.mxu0 0.0
    %241 = vmatprep.subr.mxu0 0.0
    %242 = vmatpush1.msra.mxu0 0.0
    %243 = vmatprep.subr.mxu0 0.0
    %244 = vmatpush1.msra.mxu0 0.0
    %245 = vmatprep.subr.mxu0 0.0
    %246 = vmatpush1.msra.mxu0 0.0
    %247 = vmatprep.subr.mxu0 0.0
    %248 = vmatpush1.msra.mxu0 0.0
    %249 = vmatprep.subr.mxu0 0.0
    %250 = vmatpush1.msra.mxu0 0.0
    %251 = vmatprep.subr.mxu0 0.0
    %252 = vmatpush1.msra.mxu0 0.0
    %253 = vmatprep.subr.mxu0 0.0
    %254 = vmatpush1.msra.mxu0 0.0
    %255 = vmatprep.subr.mxu0 0.0
    %256 = vmatpush1.msra.mxu0 0.0
    %257 = vmatprep.subr.mxu0 0.0
    %258 = vmatpush1.msra.mxu0 0.0
    %259 = vmatprep.subr.mxu0 0.0
    %260 = vmatpush1.msra.mxu0 0.0
    %261 = vmatprep.subr.mxu0 0.0
    %262 = vmatpush1.msra.mxu0 0.0
    %263 = vmatprep.subr.mxu0 0.0
    %264 = vmatpush1.msra.mxu0 0.0
    %265 = vmatprep.subr.mxu0 0.0
    %266 = vmatpush1.msra.mxu0 0.0
    %267 = vmatprep.subr.mxu0 0.0
    %268 = vmatpush1.msra.mxu0 0.0
    %269 = vmatprep.subr.mxu0 0.0
    %270 = vmatpush1.msra.mxu0 0.0
    %271 = vmatprep.subr.mxu0 0.0
    %272 = vmatpush1.msra.mxu0 0.0
    %273 = vmatprep.subr.mxu0 0.0
    %274 = vmatpush1.msra.mxu0 0.0
    %275 = vmatprep.subr.mxu0 0.0
    %276 = vmatpush1.msra.mxu0 0.0
    %277 = vmatprep.subr.mxu0 0.0
    %278 = vmatpush1.msra.mxu0 0.0
    %279 = vmatprep.subr.mxu0 0.0
    %280 = vmatpush1.msra.mxu0 0.0
    %281 = vmatprep.subr.mxu0 0.0
    %282 = vmatpush1.msra.mxu0 0.0
    %283 = vmatprep.subr.mxu0 0.0
    %284 = vmatpush1.msra.mxu0 0.0
    %285 = vmatprep.subr.mxu0 0.0
    %286 = vmatpush1.msra.mxu0 0.0
    %287 = vmatprep.subr.mxu0 0.0
    %288 = vmatpush1.msra.mxu0 0.0
    %289 = vmatprep.subr.mxu0 0.0
    %290 = vmatpush1.msra.mxu0 0.0
    %291 = vmatprep.subr.mxu0 0.0
    %292 = vmatpush1.msra.mxu0 0.0
    %293 = vmatprep.subr.mxu0 0.0
    %294 = vmatpush1.msra.mxu0 0.0
    %295 = vmatprep.subr.mxu0 0.0
    %296 = vmatpush1.msra.mxu0 0.0
    %297 = vmatprep.mubr.f32.mxu0 0.0
    %298 = vmatmul.mubr.f32.gmra.mrb[0].mxu0 %v227
    %v299 = vpop.f32.mrb[0].mxu0
    %v300 = vadd.f32 0.0, %v299
    %v301 = vpop.f32.mrb[0].mxu0
    %302 = vdwg.mxu0
    %v303 = vmul.f32 %v143, %v300
    %v304 = vld [vmem:[%s10] sm:$0x7]
    %v305 = vsel %vm225, %v303, -inf
    %306 = vmax.xlane.f32.xlu0 %v305
    %v307 = vpop.xlane.xlu0 %306
    %v308 = vlaneseq
    %v309 = vshrl.u32 %v308, 7
    %v310 = vsub.s32 0, %v309
    %v311 = vrot.slane %v304, %v310
    %v312 = vmul.f32 %v307, %v311
    %v313 = vadd.f32 %v312, 0.0
    %vm314 = vcmask 48152
    %v315 = vsel %vm314, %v303, -inf
    %316 = vmax.xlane.f32.xlu0 %v315
    %v317 = vpop.xlane.xlu0 %316
    %v318 = vlaneseq
    %v319 = vshrl.u32 %v318, 7
    %v320 = vsub.s32 1, %v319
    %v321 = vrot.slane %v304, %v320
    %v322 = vmul.f32 %v317, %v321
    %v323 = vadd.f32 %v313, %v322
    %vm324 = vcmask 72752
    %v325 = vsel %vm324, %v303, -inf
    %326 = vmax.xlane.f32.xlu0 %v325
    %v327 = vpop.xlane.xlu0 %326
    %v328 = vlaneseq
    %v329 = vshrl.u32 %v328, 7
    %v330 = vsub.s32 2, %v329
    %v331 = vrot.slane %v304, %v330
    %v332 = vmul.f32 %v327, %v331
    %v333 = vadd.f32 %v323, %v332
    %v334 = vsel %vm225, %v333, 0.0
    %335 = vadd.xlane.f32.xlu0 %v334
    %v336 = vpop.xlane.xlu0 %335
    %v337 = vrcp.pop 3.0
    %v338 = vmul.f32 %v336, %v337
    %vm339 = vcmask 7168
    %340 = vst.msk [vmem:[%s11] sm:$0xff] %vm339, %v338
    %v341 = vsel %vm225, %v333, -inf
    %342 = vmax.xlane.f32.xlu0 %v341
    %v343 = vpop.xlane.xlu0 %342
    %v344 = vsub.f32 %v333, %v343
    %v345 = vmul.f32 %v344, 1.442695
    %v346 = vpow.pop %v345
    %v347 = vsel %vm225, %v346, 0.0
    %348 = vadd.xlane.f32.xlu0 %v347
    %v349 = vpop.xlane.xlu0 %348
    %v350 = vrcp.pop %v349
    %v351 = vmul.f32 %v346, %v350
    %v352 = vld [vmem:[%s9] sm:$0x7]
    %v354 = vsel %vm225, %v351, 0
    %v357 = vsel %vm229, %v352, 0
    %359 = vmatprep.subr.mxu0 0.0
    %360 = vmatpush1.msra.mxu0 %v357
    %361 = vmatprep.subr.mxu0 0.0
    %362 = vmatpush1.msra.mxu0 0.0
    %363 = vmatprep.subr.mxu0 0.0
    %364 = vmatpush1.msra.mxu0 0.0
    %365 = vmatprep.subr.mxu0 0.0
    %366 = vmatpush1.msra.mxu0 0.0
    %367 = vmatprep.subr.mxu0 0.0
    %368 = vmatpush1.msra.mxu0 0.0
    %369 = vmatprep.subr.mxu0 0.0
    %370 = vmatpush1.msra.mxu0 0.0
    %371 = vmatprep.subr.mxu0 0.0
    %372 = vmatpush1.msra.mxu0 0.0
    %373 = vmatprep.subr.mxu0 0.0
    %374 = vmatpush1.msra.mxu0 0.0
    %375 = vmatprep.subr.mxu0 0.0
    %376 = vmatpush1.msra.mxu0 0.0
    %377 = vmatprep.subr.mxu0 0.0
    %378 = vmatpush1.msra.mxu0 0.0
    %379 = vmatprep.subr.mxu0 0.0
    %380 = vmatpush1.msra.mxu0 0.0
    %381 = vmatprep.subr.mxu0 0.0
    %382 = vmatpush1.msra.mxu0 0.0
    %383 = vmatprep.subr.mxu0 0.0
    %384 = vmatpush1.msra.mxu0 0.0
    %385 = vmatprep.subr.mxu0 0.0
    %386 = vmatpush1.msra.mxu0 0.0
    %387 = vmatprep.subr.mxu0 0.0
    %388 = vmatpush1.msra.mxu0 0.0
    %389 = vmatprep.subr.mxu0 0.0
    %390 = vmatpush1.msra.mxu0 0.0
    %391 = vmatprep.subr.mxu0 0.0
    %392 = vmatpush1.msra.mxu0 0.0
    %393 = vmatprep.subr.mxu0 0.0
    %394 = vmatpush1.msra.mxu0 0.0
    %395 = vmatprep.subr.mxu0 0.0
    %396 = vmatpush1.msra.mxu0 0.0
    %397 = vmatprep.subr.mxu0 0.0
    %398 = vmatpush1.msra.mxu0 0.0
    %399 = vmatprep.subr.mxu0 0.0
    %400 = vmatpush1.msra.mxu0 0.0
    %401 = vmatprep.subr.mxu0 0.0
    %402 = vmatpush1.msra.mxu0 0.0
    %403 = vmatprep.subr.mxu0 0.0
    %404 = vmatpush1.msra.mxu0 0.0
    %405 = vmatprep.subr.mxu0 0.0
    %406 = vmatpush1.msra.mxu0 0.0
    %407 = vmatprep.subr.mxu0 0.0
    %408 = vmatpush1.msra.mxu0 0.0
    %409 = vmatprep.subr.mxu0 0.0
    %410 = vmatpush1.msra.mxu0 0.0
    %411 = vmatprep.subr.mxu0 0.0
    %412 = vmatpush1.msra.mxu0 0.0
    %413 = vmatprep.subr.mxu0 0.0
    %414 = vmatpush1.msra.mxu0 0.0
    %415 = vmatprep.subr.mxu0 0.0
    %416 = vmatpush1.msra.mxu0 0.0
    %417 = vmatprep.subr.mxu0 0.0
    %418 = vmatpush1.msra.mxu0 0.0
    %419 = vmatprep.subr.mxu0 0.0
    %420 = vmatpush1.msra.mxu0 0.0
    %421 = vmatprep.subr.mxu0 0.0
    %422 = vmatpush1.msra.mxu0 0.0
    %423 = vmatprep.mubr.f32.mxu0 0.0
    %424 = vmatmul.mubr.f32.gmra.mrb[0].mxu0 %v354
    %v425 = vpop.f32.mrb[0].mxu0
    %v426 = vadd.f32 0.0, %v425
    %v427 = vpop.f32.mrb[0].mxu0
    %428 = vdwg.mxu0
    %v429 = vmul.f32 %v42, %v426
    %v430 = vld [vmem:[%s3] sm:$0xff]
    %v431 = vld [vmem:[%s3 + $0x8] sm:$0xff]
    %v432 = vld [vmem:[%s3 + $0x10] sm:$0xff]
    %v433 = vld [vmem:[%s3 + $0x18] sm:$0xff]
    %v434 = vld [vmem:[%s3 + $0x20] sm:$0xff]
    %v435 = vld [vmem:[%s3 + $0x28] sm:$0xff]
    %v436 = vld [vmem:[%s3 + $0x30] sm:$0xff]
    %v437 = vld [vmem:[%s3 + $0x38] sm:$0xff]
    %v438 = vld [vmem:[%s3 + $0x40] sm:$0xff]
    %v439 = vld [vmem:[%s3 + $0x48] sm:$0xff]
    %v440 = vld [vmem:[%s3 + $0x50] sm:$0xff]
    %v441 = vld [vmem:[%s3 + $0x58] sm:$0xff]
    %v442 = vld [vmem:[%s4] sm:$0x1]
    %v444 = vlaneseq
    %v445 = vshrl.u32 %v444, 7
    %v446 = vsub.s32 0, %v445
    %v447 = vrot.slane %v442, %v446
    %v450 = vsel %vm63, %v429, 0
    %452 = vmatprep.subr.mxu0 0.0
    %453 = vmatpush1.msra.mxu0 %v430
    %454 = vmatprep.subr.mxu0 0.0
    %455 = vmatpush1.msra.mxu0 %v431
    %456 = vmatprep.subr.mxu0 0.0
    %457 = vmatpush1.msra.mxu0 %v432
    %458 = vmatprep.subr.mxu0 0.0
    %459 = vmatpush1.msra.mxu0 %v433
    %460 = vmatprep.subr.mxu0 0.0
    %461 = vmatpush1.msra.mxu0 %v434
    %462 = vmatprep.subr.mxu0 0.0
    %463 = vmatpush1.msra.mxu0 %v435
    %464 = vmatprep.subr.mxu0 0.0
    %465 = vmatpush1.msra.mxu0 %v436
    %466 = vmatprep.subr.mxu0 0.0
    %467 = vmatpush1.msra.mxu0 %v437
    %468 = vmatprep.subr.mxu0 0.0
    %469 = vmatpush1.msra.mxu0 %v438
    %470 = vmatprep.subr.mxu0 0.0
    %471 = vmatpush1.msra.mxu0 %v439
    %472 = vmatprep.subr.mxu0 0.0
    %473 = vmatpush1.msra.mxu0 %v440
    %474 = vmatprep.subr.mxu0 0.0
    %475 = vmatpush1.msra.mxu0 %v441
    %476 = vmatprep.subr.mxu0 0.0
    %477 = vmatpush1.msra.mxu0 0.0
    %478 = vmatprep.subr.mxu0 0.0
    %479 = vmatpush1.msra.mxu0 0.0
    %480 = vmatprep.subr.mxu0 0.0
    %481 = vmatpush1.msra.mxu0 0.0
    %482 = vmatprep.subr.mxu0 0.0
    %483 = vmatpush1.msra.mxu0 0.0
    %484 = vmatprep.subr.mxu0 0.0
    %485 = vmatpush1.msra.mxu0 0.0
    %486 = vmatprep.subr.mxu0 0.0
    %487 = vmatpush1.msra.mxu0 0.0
    %488 = vmatprep.subr.mxu0 0.0
    %489 = vmatpush1.msra.mxu0 0.0
    %490 = vmatprep.subr.mxu0 0.0
    %491 = vmatpush1.msra.mxu0 0.0
    %492 = vmatprep.subr.mxu0 0.0
    %493 = vmatpush1.msra.mxu0 0.0
    %494 = vmatprep.subr.mxu0 0.0
    %495 = vmatpush1.msra.mxu0 0.0
    %496 = vmatprep.subr.mxu0 0.0
    %497 = vmatpush1.msra.mxu0 0.0
    %498 = vmatprep.subr.mxu0 0.0
    %499 = vmatpush1.msra.mxu0 0.0
    %500 = vmatprep.subr.mxu0 0.0
    %501 = vmatpush1.msra.mxu0 0.0
    %502 = vmatprep.subr.mxu0 0.0
    %503 = vmatpush1.msra.mxu0 0.0
    %504 = vmatprep.subr.mxu0 0.0
    %505 = vmatpush1.msra.mxu0 0.0
    %506 = vmatprep.subr.mxu0 0.0
    %507 = vmatpush1.msra.mxu0 0.0
    %508 = vmatprep.subr.mxu0 0.0
    %509 = vmatpush1.msra.mxu0 0.0
    %510 = vmatprep.subr.mxu0 0.0
    %511 = vmatpush1.msra.mxu0 0.0
    %512 = vmatprep.subr.mxu0 0.0
    %513 = vmatpush1.msra.mxu0 0.0
    %514 = vmatprep.subr.mxu0 0.0
    %515 = vmatpush1.msra.mxu0 0.0
    %516 = vmatprep.mubr.f32.mxu0 0.0
    %517 = vmatmul.mubr.f32.gmra.mrb[0].mxu0 %v450
    %v518 = vpop.f32.mrb[0].mxu0
    %v519 = vadd.f32 %v447, %v518
    %v520 = vpop.f32.mrb[0].mxu0
    %521 = vdwg.mxu0
    %v522 = vsel %vm225, %v519, -inf
    %523 = vmax.xlane.f32.xlu0 %v522
    %v524 = vpop.xlane.xlu0 %523
    %v525 = vsub.f32 %v519, %v524
    %v526 = vmul.f32 %v525, 1.442695
    %v527 = vpow.pop %v526
    %v528 = vsel %vm225, %v527, 0.0
    %529 = vadd.xlane.f32.xlu0 %v528
    %v530 = vpop.xlane.xlu0 %529
    %v531 = vrcp.pop %v530
    %v532 = vmul.f32 %v527, %v531
    %533 = vst.msk [vmem:[%s13] sm:$0xff] %vm225, %v532
    %v534 = vsel %vm225, %v532, -inf
    %535 = vmax.xlane.f32.xlu0 %v534
    %v536 = vpop.xlane.xlu0 %535
    %v537 = vsub.f32 %v532, %v536
    %v538 = vmul.f32 %v537, 1.442695
    %v539 = vpow.pop %v538
    %v540 = vsel %vm225, %v539, 0.0
    %541 = vadd.xlane.f32.xlu0 %v540
    %v542 = vpop.xlane.xlu0 %541
    %v543 = vlog2.pop %v542
    %v544 = vmul.f32 %v543, 0.6931472
    %v545 = vsub.f32 %v537, %v544
    %v546 = vmul.f32 %v43, %v545
    %v547 = vsel %vm225, %v546, 0.0
    %548 = vadd.xlane.f32.xlu0 %v547
    %v549 = vpop.xlane.xlu0 %548
    %v550 = vrot.slane %v549, 4
    %v551 = vadd.f32 %v549, %v550
    %v552 = vrot.slane %v551, 2
    %v553 = vadd.f32 %v551, %v552
    %v554 = vrot.slane %v553, 1
    %v555 = vadd.f32 %v553, %v554
    %s556 = vtos %v555
    %v557 = vstv %s556
    %v558 = vsub.f32 0.0, %v557
    %v559 = vrcp.pop 8.0
    %v560 = vmul.f32 %v558, %v559
    %v561 = vsel %vm137, %v303, -inf
    %562 = vmax.xlane.f32.xlu0 %v561
    %v563 = vpop.xlane.xlu0 %562
    %v564 = vsub.f32 %v303, %v563
    %v565 = vmul.f32 %v564, 1.442695
    %v566 = vpow.pop %v565
    %v567 = vld [vmem:[%s6] sm:$0xff]
    %v568 = vld [vmem:[%s6 + $0x8] sm:$0x1]
    %v570 = vsel %vm137, %v566, 0
    %v573 = vsel %vm149, %v568, 0
    %575 = vmatprep.subr.mxu0 0.0
    %576 = vmatpush1.msra.mxu0 %v567
    %577 = vmatprep.subr.mxu0 0.0
    %578 = vmatpush1.msra.mxu0 %v573
    %579 = vmatprep.subr.mxu0 0.0
    %580 = vmatpush1.msra.mxu0 0.0
    %581 = vmatprep.subr.mxu0 0.0
    %582 = vmatpush1.msra.mxu0 0.0
    %583 = vmatprep.subr.mxu0 0.0
    %584 = vmatpush1.msra.mxu0 0.0
    %585 = vmatprep.subr.mxu0 0.0
    %586 = vmatpush1.msra.mxu0 0.0
    %587 = vmatprep.subr.mxu0 0.0
    %588 = vmatpush1.msra.mxu0 0.0
    %589 = vmatprep.subr.mxu0 0.0
    %590 = vmatpush1.msra.mxu0 0.0
    %591 = vmatprep.subr.mxu0 0.0
    %592 = vmatpush1.msra.mxu0 0.0
    %593 = vmatprep.subr.mxu0 0.0
    %594 = vmatpush1.msra.mxu0 0.0
    %595 = vmatprep.subr.mxu0 0.0
    %596 = vmatpush1.msra.mxu0 0.0
    %597 = vmatprep.subr.mxu0 0.0
    %598 = vmatpush1.msra.mxu0 0.0
    %599 = vmatprep.subr.mxu0 0.0
    %600 = vmatpush1.msra.mxu0 0.0
    %601 = vmatprep.subr.mxu0 0.0
    %602 = vmatpush1.msra.mxu0 0.0
    %603 = vmatprep.subr.mxu0 0.0
    %604 = vmatpush1.msra.mxu0 0.0
    %605 = vmatprep.subr.mxu0 0.0
    %606 = vmatpush1.msra.mxu0 0.0
    %607 = vmatprep.subr.mxu0 0.0
    %608 = vmatpush1.msra.mxu0 0.0
    %609 = vmatprep.subr.mxu0 0.0
    %610 = vmatpush1.msra.mxu0 0.0
    %611 = vmatprep.subr.mxu0 0.0
    %612 = vmatpush1.msra.mxu0 0.0
    %613 = vmatprep.subr.mxu0 0.0
    %614 = vmatpush1.msra.mxu0 0.0
    %615 = vmatprep.subr.mxu0 0.0
    %616 = vmatpush1.msra.mxu0 0.0
    %617 = vmatprep.subr.mxu0 0.0
    %618 = vmatpush1.msra.mxu0 0.0
    %619 = vmatprep.subr.mxu0 0.0
    %620 = vmatpush1.msra.mxu0 0.0
    %621 = vmatprep.subr.mxu0 0.0
    %622 = vmatpush1.msra.mxu0 0.0
    %623 = vmatprep.subr.mxu0 0.0
    %624 = vmatpush1.msra.mxu0 0.0
    %625 = vmatprep.subr.mxu0 0.0
    %626 = vmatpush1.msra.mxu0 0.0
    %627 = vmatprep.subr.mxu0 0.0
    %628 = vmatpush1.msra.mxu0 0.0
    %629 = vmatprep.subr.mxu0 0.0
    %630 = vmatpush1.msra.mxu0 0.0
    %631 = vmatprep.subr.mxu0 0.0
    %632 = vmatpush1.msra.mxu0 0.0
    %633 = vmatprep.subr.mxu0 0.0
    %634 = vmatpush1.msra.mxu0 0.0
    %635 = vmatprep.subr.mxu0 0.0
    %636 = vmatpush1.msra.mxu0 0.0
    %637 = vmatprep.subr.mxu0 0.0
    %638 = vmatpush1.msra.mxu0 0.0
    %639 = vmatprep.mubr.f32.mxu0 0.0
    %640 = vmatmul.mubr.f32.gmra.mrb[0].mxu0 %v570
    %v641 = vpop.f32.mrb[0].mxu0
    %v642 = vadd.f32 0.0, %v641
    %v643 = vpop.f32.mrb[0].mxu0
    %644 = vdwg.mxu0
    %v645 = vlog2.pop %v642
    %v646 = vmul.f32 %v645, 0.6931472
    %v647 = vld [vmem:[%s7] sm:$0x7]
    %v649 = vsel %vm225, %v646, 0
    %v652 = vsel %vm229, %v647, 0
    %654 = vmatprep.subr.mxu0 0.0
    %655 = vmatpush1.msra.mxu0 %v652
    %656 = vmatprep.subr.mxu0 0.0
    %657 = vmatpush1.msra.mxu0 0.0
    %658 = vmatprep.subr.mxu0 0.0
    %659 = vmatpush1.msra.mxu0 0.0
    %660 = vmatprep.subr.mxu0 0.0
    %661 = vmatpush1.msra.mxu0 0.0
    %662 = vmatprep.subr.mxu0 0.0
    %663 = vmatpush1.msra.mxu0 0.0
    %664 = vmatprep.subr.mxu0 0.0
    %665 = vmatpush1.msra.mxu0 0.0
    %666 = vmatprep.subr.mxu0 0.0
    %667 = vmatpush1.msra.mxu0 0.0
    %668 = vmatprep.subr.mxu0 0.0
    %669 = vmatpush1.msra.mxu0 0.0
    %670 = vmatprep.subr.mxu0 0.0
    %671 = vmatpush1.msra.mxu0 0.0
    %672 = vmatprep.subr.mxu0 0.0
    %673 = vmatpush1.msra.mxu0 0.0
    %674 = vmatprep.subr.mxu0 0.0
    %675 = vmatpush1.msra.mxu0 0.0
    %676 = vmatprep.subr.mxu0 0.0
    %677 = vmatpush1.msra.mxu0 0.0
    %678 = vmatprep.subr.mxu0 0.0
    %679 = vmatpush1.msra.mxu0 0.0
    %680 = vmatprep.subr.mxu0 0.0
    %681 = vmatpush1.msra.mxu0 0.0
    %682 = vmatprep.subr.mxu0 0.0
    %683 = vmatpush1.msra.mxu0 0.0
    %684 = vmatprep.subr.mxu0 0.0
    %685 = vmatpush1.msra.mxu0 0.0
    %686 = vmatprep.subr.mxu0 0.0
    %687 = vmatpush1.msra.mxu0 0.0
    %688 = vmatprep.subr.mxu0 0.0
    %689 = vmatpush1.msra.mxu0 0.0
    %690 = vmatprep.subr.mxu0 0.0
    %691 = vmatpush1.msra.mxu0 0.0
    %692 = vmatprep.subr.mxu0 0.0
    %693 = vmatpush1.msra.mxu0 0.0
    %694 = vmatprep.subr.mxu0 0.0
    %695 = vmatpush1.msra.mxu0 0.0
    %696 = vmatprep.subr.mxu0 0.0
    %697 = vmatpush1.msra.mxu0 0.0
    %698 = vmatprep.subr.mxu0 0.0
    %699 = vmatpush1.msra.mxu0 0.0
    %700 = vmatprep.subr.mxu0 0.0
    %701 = vmatpush1.msra.mxu0 0.0
    %702 = vmatprep.subr.mxu0 0.0
    %703 = vmatpush1.msra.mxu0 0.0
    %704 = vmatprep.subr.mxu0 0.0
    %705 = vmatpush1.msra.mxu0 0.0
    %706 = vmatprep.subr.mxu0 0.0
    %707 = vmatpush1.msra.mxu0 0.0
    %708 = vmatprep.subr.mxu0 0.0
    %709 = vmatpush1.msra.mxu0 0.0
    %710 = vmatprep.subr.mxu0 0.0
    %711 = vmatpush1.msra.mxu0 0.0
    %712 = vmatprep.subr.mxu0 0.0
    %713 = vmatpush1.msra.mxu0 0.0
    %714 = vmatprep.subr.mxu0 0.0
    %715 = vmatpush1.msra.mxu0 0.0
    %716 = vmatprep.subr.mxu0 0.0
    %717 = vmatpush1.msra.mxu0 0.0
    %718 = vmatprep.mubr.f32.mxu0 0.0
    %719 = vmatmul.mubr.f32.gmra.mrb[0].mxu0 %v649
    %v720 = vpop.f32.mrb[0].mxu0
    %v721 = vadd.f32 0.0, %v720
    %v722 = vpop.f32.mrb[0].mxu0
    %723 = vdwg.mxu0
    %v724 = vsub.f32 %v564, %v721
    %v725 = vld [vmem:[%s8] sm:$0xff]
    %v726 = vld [vmem:[%s8 + $0x8] sm:$0x1]
    %v728 = vsel %vm137, %v724, 0
    %v731 = vsel %vm149, %v726, 0
    %733 = vmatprep.subr.mxu0 0.0
    %734 = vmatpush1.msra.mxu0 %v725
    %735 = vmatprep.subr.mxu0 0.0
    %736 = vmatpush1.msra.mxu0 %v731
    %737 = vmatprep.subr.mxu0 0.0
    %738 = vmatpush1.msra.mxu0 0.0
    %739 = vmatprep.subr.mxu0 0.0
    %740 = vmatpush1.msra.mxu0 0.0
    %741 = vmatprep.subr.mxu0 0.0
    %742 = vmatpush1.msra.mxu0 0.0
    %743 = vmatprep.subr.mxu0 0.0
    %744 = vmatpush1.msra.mxu0 0.0
    %745 = vmatprep.subr.mxu0 0.0
    %746 = vmatpush1.msra.mxu0 0.0
    %747 = vmatprep.subr.mxu0 0.0
    %748 = vmatpush1.msra.mxu0 0.0
    %749 = vmatprep.subr.mxu0 0.0
    %750 = vmatpush1.msra.mxu0 0.0
    %751 = vmatprep.subr.mxu0 0.0
    %752 = vmatpush1.msra.mxu0 0.0
    %753 = vmatprep.subr.mxu0 0.0
    %754 = vmatpush1.msra.mxu0 0.0
    %755 = vmatprep.subr.mxu0 0.0
    %756 = vmatpush1.msra.mxu0 0.0
    %757 = vmatprep.subr.mxu0 0.0
    %758 = vmatpush1.msra.mxu0 0.0
    %759 = vmatprep.subr.mxu0 0.0
    %760 = vmatpush1.msra.mxu0 0.0
    %761 = vmatprep.subr.mxu0 0.0
    %762 = vmatpush1.msra.mxu0 0.0
    %763 = vmatprep.subr.mxu0 0.0
    %764 = vmatpush1.msra.mxu0 0.0
    %765 = vmatprep.subr.mxu0 0.0
    %766 = vmatpush1.msra.mxu0 0.0
    %767 = vmatprep.subr.mxu0 0.0
    %768 = vmatpush1.msra.mxu0 0.0
    %769 = vmatprep.subr.mxu0 0.0
    %770 = vmatpush1.msra.mxu0 0.0
    %771 = vmatprep.subr.mxu0 0.0
    %772 = vmatpush1.msra.mxu0 0.0
    %773 = vmatprep.subr.mxu0 0.0
    %774 = vmatpush1.msra.mxu0 0.0
    %775 = vmatprep.subr.mxu0 0.0
    %776 = vmatpush1.msra.mxu0 0.0
    %777 = vmatprep.subr.mxu0 0.0
    %778 = vmatpush1.msra.mxu0 0.0
    %779 = vmatprep.subr.mxu0 0.0
    %780 = vmatpush1.msra.mxu0 0.0
    %781 = vmatprep.subr.mxu0 0.0
    %782 = vmatpush1.msra.mxu0 0.0
    %783 = vmatprep.subr.mxu0 0.0
    %784 = vmatpush1.msra.mxu0 0.0
    %785 = vmatprep.subr.mxu0 0.0
    %786 = vmatpush1.msra.mxu0 0.0
    %787 = vmatprep.subr.mxu0 0.0
    %788 = vmatpush1.msra.mxu0 0.0
    %789 = vmatprep.subr.mxu0 0.0
    %790 = vmatpush1.msra.mxu0 0.0
    %791 = vmatprep.subr.mxu0 0.0
    %792 = vmatpush1.msra.mxu0 0.0
    %793 = vmatprep.subr.mxu0 0.0
    %794 = vmatpush1.msra.mxu0 0.0
    %795 = vmatprep.subr.mxu0 0.0
    %796 = vmatpush1.msra.mxu0 0.0
    %797 = vmatprep.mubr.f32.mxu0 0.0
    %798 = vmatmul.mubr.f32.gmra.mrb[0].mxu0 %v728
    %v799 = vpop.f32.mrb[0].mxu0
    %v800 = vadd.f32 0.0, %v799
    %v801 = vpop.f32.mrb[0].mxu0
    %802 = vdwg.mxu0
    %v803 = vmul.f32 %v43, %v800
    %v804 = vsel %vm225, %v803, 0.0
    %805 = vadd.xlane.f32.xlu0 %v804
    %v806 = vpop.xlane.xlu0 %805
    %v807 = vrot.slane %v806, 4
    %v808 = vadd.f32 %v806, %v807
    %v809 = vrot.slane %v808, 2
    %v810 = vadd.f32 %v808, %v809
    %v811 = vrot.slane %v810, 1
    %v812 = vadd.f32 %v810, %v811
    %s813 = vtos %v812
    %v814 = vstv %s813
    %v815 = vsub.f32 0.0, %v814
    %v816 = vrcp.pop 24.0
    %v817 = vmul.f32 %v815, %v816
    %v818 = vadd.f32 %v560, %v817
    %vm819 = vcmask 0
    %820 = vst.msk [vmem:[#allocation2] sm:$0x1] %vm819, %v818
    // Predicated region
    $region46: #{dmbf_forward.1} parent=1 // pred_check
      _
    $region47: #{dmbf_forward.1} parent=1 // pred_check_branch
      %822 = sbr.rel (0) target = $region49
    $region48: #{dmbf_forward.1} parent=1 // pred_region
      _
    $region49: #{dmbf_forward.1} parent=1 // pred_fallthru
      _
    // Predicated region
    $region50: #{dmbf_forward.1} parent=1 // pred_check
      _
    $region51: #{dmbf_forward.1} parent=1 // pred_check_branch
      %824 = sbr.rel (0) target = $region53
    $region52: #{dmbf_forward.1} parent=1 // pred_region
      %s826 = ssub.s32 16, 16
      %827 = vsyncadd [#allocation3], %s826
      %s829 = sshll.u32 [#allocation2], 4
      %s830 = int_to_ptr.vmem [resolvable:$true] %s829
      %832 = dma.vmem_to_hbm [thread:$0]  %s830, 16, %s12, [#allocation3]
    $region53: #{dmbf_forward.1} parent=1 // pred_fallthru
      _
    // Predicated region
    $region54: #{dmbf_forward.1} parent=1 // pred_check
      _
    $region55: #{dmbf_forward.1} parent=1 // pred_check_branch
      %834 = sbr.rel (0) target = $region57
    $region56: #{dmbf_forward.1} parent=1 // pred_region
      _
    $region57: #{dmbf_forward.1} parent=1 // pred_fallthru
      _
    // Predicated region
    $region58: #{dmbf_forward.1} parent=1 // pred_check
      _
    $region59: #{dmbf_forward.1} parent=1 // pred_check_branch
      %836 = sbr.rel (0) target = $region61
    $region60: #{dmbf_forward.1} parent=1 // pred_region
      _
    $region61: #{dmbf_forward.1} parent=1 // pred_fallthru
      _
    // Predicated region
    $region62: #{dmbf_forward.1} parent=1 // pred_check
      _
    $region63: #{dmbf_forward.1} parent=1 // pred_check_branch
      %838 = sbr.rel (0) target = $region65
    $region64: #{dmbf_forward.1} parent=1 // pred_region
      %839 = dma.done [#allocation3], 16
    $region65: #{dmbf_forward.1} parent=1 // pred_fallthru
      _
    // Predicated region
    $region66: #{dmbf_forward.1} parent=1 // pred_check
      _
    $region67: #{dmbf_forward.1} parent=1 // pred_check_branch
      %841 = sbr.rel (0) target = $region69
    $region68: #{dmbf_forward.1} parent=1 // pred_region
      _
    $region69: #{dmbf_forward.1} parent=1 // pred_fallthru
      _
    %842 = vsyncpa [#allocation3], 1

</llo_original>
